<compile_context>
chip_gen: v6e
topology: v6e:2x2x1
jax: 0.10.0
libtpu: 0.0.40
codegen_flags: <defaults>
</compile_context>

<pallas_src>
import jax
import jax.numpy as jnp
from jax.experimental import pallas as pl
from jax.experimental.pallas import tpu as pltpu

HIDDEN1 = 256
HIDDEN2 = 128
LANE = 128


def mlp_kernel(x_ref, w1_ref, b1_ref, w2_ref, b2_ref, w3_ref, b3_ref, o_ref):
    # Layer 1: (TILE_B, Kp) bf16 @ (Kp, 256) bf16 -> f32 acc, + bias, ReLU
    h1 = jnp.dot(x_ref[...], w1_ref[...], preferred_element_type=jnp.float32)
    h1 = jnp.maximum(h1 + b1_ref[...], 0.0)
    # Dropout(0.3) -> identity (inference)

    # Layer 2: (TILE_B, 256) bf16 @ (256, 128) bf16 -> f32 acc, + bias, ReLU
    h2 = jnp.dot(h1.astype(jnp.bfloat16), w2_ref[...], preferred_element_type=jnp.float32)
    h2 = jnp.maximum(h2 + b2_ref[...], 0.0)
    # Dropout(0.3) -> identity (inference)

    # Layer 3 (N=1): keep off the MXU -> VPU multiply + XLU lane reduction (f32).
    y = jnp.sum(h2 * w3_ref[...], axis=-1, keepdims=True) + b3_ref[...]   # (TILE_B, 1)

    # Lane-dense store: broadcast scalar-per-row across 128 lanes (wrapper keeps column 0).
    o_ref[...] = jnp.broadcast_to(y, o_ref.shape)


def mlp_forward(x, params, tile_b=256):
    """x: (B, input_size) f32.  Returns (B, 1) f32."""
    w1, b1, w2, b2, w3, b3 = params
    B, D = x.shape

    # Pad K (input_size) up to a multiple of 128 lanes with zeros (numerically identical).
    k_pad = max(LANE, pl.cdiv(D, LANE) * LANE)
    if k_pad != D:
        x = jnp.pad(x, ((0, 0), (0, k_pad - D)))
        w1 = jnp.pad(w1, ((0, k_pad - D), (0, 0)))

    # Pad batch up to a multiple of the batch tile.
    b_pad = pl.cdiv(B, tile_b) * tile_b
    if b_pad != B:
        x = jnp.pad(x, ((0, b_pad - B), (0, 0)))
    num_tiles = b_pad // tile_b

    # bf16 MXU inputs, f32 accumulation inside the kernel.
    x_bf = x.astype(jnp.bfloat16)
    w1_bf = w1.astype(jnp.bfloat16)
    w2_bf = w2.astype(jnp.bfloat16)
    w3_row = w3.reshape(1, HIDDEN2).astype(jnp.float32)   # used on the VPU path, keep f32
    b3_s = b3.reshape(1, 1).astype(jnp.float32)

    out = pl.pallas_call(
        mlp_kernel,
        out_shape=jax.ShapeDtypeStruct((b_pad, LANE), jnp.float32),
        grid=(num_tiles,),
        in_specs=[
            pl.BlockSpec((tile_b, k_pad), lambda i: (i, 0)),       # x: tiled over batch
            pl.BlockSpec((k_pad, HIDDEN1), lambda i: (0, 0)),      # w1: resident
            pl.BlockSpec((1, HIDDEN1), lambda i: (0, 0)),          # b1: resident
            pl.BlockSpec((HIDDEN1, HIDDEN2), lambda i: (0, 0)),    # w2: resident
            pl.BlockSpec((1, HIDDEN2), lambda i: (0, 0)),          # b2: resident
            pl.BlockSpec((1, HIDDEN2), lambda i: (0, 0)),          # w3 (row): resident
            pl.BlockSpec((1, 1), lambda i: (0, 0)),                # b3: resident
        ],
        out_specs=pl.BlockSpec((tile_b, LANE), lambda i: (i, 0)),
        compiler_params=pltpu.CompilerParams(
            dimension_semantics=("parallel",)),
    )(x_bf, w1_bf, b1, w2_bf, b2, w3_row, b3_s)

    return out[:B, 0:1]


def init_params(key, input_size):
    """Deterministic init mimicking PyTorch nn.Linear (uniform +/- 1/sqrt(fan_in)).
    Weights stored transposed vs. PyTorch ((in_features, out_features)) so the kernel
    computes plain x @ W + b."""
    def linear(key, fan_in, fan_out):
        kw, kb = jax.random.split(key)
        bound = 1.0 / jnp.sqrt(fan_in)
        w = jax.random.uniform(kw, (fan_in, fan_out), jnp.float32, -bound, bound)
        b = jax.random.uniform(kb, (1, fan_out), jnp.float32, -bound, bound)
        return w, b

    k1, k2, k3 = jax.random.split(key, 3)
    w1, b1 = linear(k1, input_size, HIDDEN1)
    w2, b2 = linear(k2, HIDDEN1, HIDDEN2)
    w3, b3 = linear(k3, HIDDEN2, 1)
    return (w1, b1, w2, b2, w3, b3)


if __name__ == "__main__":
    key = jax.random.PRNGKey(0)
    batch, input_size = 300, 32   # non-multiple of the tile to exercise batch padding

    kx, kp = jax.random.split(key)
    x = jax.random.normal(kx, (batch, input_size), jnp.float32)
    params = init_params(kp, input_size)

    out = mlp_forward(x, params)
    out = jax.block_until_ready(out)

    # Pure-JAX f32 reference check (kernel uses bf16 MXU inputs -> looser tolerance).
    w1, b1, w2, b2, w3, b3 = params
    ref = jnp.maximum(x @ w1 + b1, 0.0)
    ref = jnp.maximum(ref @ w2 + b2, 0.0)
    ref = ref @ w3 + b3
    assert out.shape == (batch, 1)
    assert jnp.allclose(out, ref, atol=2e-2, rtol=2e-2), float(jnp.max(jnp.abs(out - ref)))

    print("KERNEL_OK")
</pallas_src>

<mosaic_0001>
module attributes {stable_mosaic.version = 11 : i64} {
  func.func @mlp_kernel(%arg0: i32, %arg1: memref<256x128xbf16, #tpu.memory_space<vmem>>, %arg2: memref<128x256xbf16, #tpu.memory_space<vmem>>, %arg3: memref<1x256xf32, #tpu.memory_space<vmem>>, %arg4: memref<256x128xbf16, #tpu.memory_space<vmem>>, %arg5: memref<1x128xf32, #tpu.memory_space<vmem>>, %arg6: memref<1x128xf32, #tpu.memory_space<vmem>>, %arg7: memref<1x1xf32, #tpu.memory_space<vmem>>, %arg8: memref<256x128xf32, #tpu.memory_space<vmem>>) attributes {dimension_semantics = [#tpu.dimension_semantics<parallel>], iteration_bounds = array<i64: 2>, scalar_prefetch = 0 : i64, scratch_operands = 0 : i64, tpu.core_type = #tpu.core_type<tc>, window_params = [{transform_indices = @transform_0, window_bounds = array<i64: 256, 128>}, {pipeline_mode = #tpu.pipeline_mode<synchronous>, transform_indices = @transform_1, window_bounds = array<i64: 128, 256>}, {pipeline_mode = #tpu.pipeline_mode<synchronous>, transform_indices = @transform_2, window_bounds = array<i64: 1, 256>}, {pipeline_mode = #tpu.pipeline_mode<synchronous>, transform_indices = @transform_3, window_bounds = array<i64: 256, 128>}, {pipeline_mode = #tpu.pipeline_mode<synchronous>, transform_indices = @transform_4, window_bounds = array<i64: 1, 128>}, {pipeline_mode = #tpu.pipeline_mode<synchronous>, transform_indices = @transform_5, window_bounds = array<i64: 1, 128>}, {pipeline_mode = #tpu.pipeline_mode<synchronous>, transform_indices = @transform_6, window_bounds = array<i64: 1, 1>}, {transform_indices = @transform_7, window_bounds = array<i64: 256, 128>}]} {
    %c0 = arith.constant 0 : index
    %c0_0 = arith.constant 0 : index
    %0 = vector.load %arg1[%c0, %c0_0] : memref<256x128xbf16, #tpu.memory_space<vmem>>, vector<256x128xbf16>
    %c0_1 = arith.constant 0 : index
    %c0_2 = arith.constant 0 : index
    %1 = vector.load %arg2[%c0_1, %c0_2] : memref<128x256xbf16, #tpu.memory_space<vmem>>, vector<128x256xbf16>
    %cst = arith.constant dense<0.000000e+00> : vector<256x256xf32>
    %2 = tpu.matmul %0, %1, %cst {dimension_numbers = #tpu.dot_dimension_numbers<[1], [0], [0], [1], [0, 0, 1, 1], [], []>} : vector<256x128xbf16>, vector<128x256xbf16>, vector<256x256xf32> -> vector<256x256xf32>
    %c0_3 = arith.constant 0 : index
    %c0_4 = arith.constant 0 : index
    %3 = vector.load %arg3[%c0_3, %c0_4] : memref<1x256xf32, #tpu.memory_space<vmem>>, vector<1x256xf32>
    %4 = vector.broadcast %3 : vector<1x256xf32> to vector<256x256xf32>
    %5 = arith.addf %2, %4 : vector<256x256xf32>
    %cst_5 = arith.constant 0.000000e+00 : f32
    %6 = vector.broadcast %cst_5 : f32 to vector<256x256xf32>
    %7 = arith.maximumf %5, %6 : vector<256x256xf32>
    %8 = arith.truncf %7 : vector<256x256xf32> to vector<256x256xbf16>
    %c0_6 = arith.constant 0 : index
    %c0_7 = arith.constant 0 : index
    %9 = vector.load %arg4[%c0_6, %c0_7] : memref<256x128xbf16, #tpu.memory_space<vmem>>, vector<256x128xbf16>
    %cst_8 = arith.constant dense<0.000000e+00> : vector<256x128xf32>
    %10 = tpu.matmul %8, %9, %cst_8 {dimension_numbers = #tpu.dot_dimension_numbers<[1], [0], [0], [1], [0, 0, 1, 1], [], []>} : vector<256x256xbf16>, vector<256x128xbf16>, vector<256x128xf32> -> vector<256x128xf32>
    %c0_9 = arith.constant 0 : index
    %c0_10 = arith.constant 0 : index
    %11 = vector.load %arg5[%c0_9, %c0_10] : memref<1x128xf32, #tpu.memory_space<vmem>>, vector<1x128xf32>
    %12 = vector.broadcast %11 : vector<1x128xf32> to vector<256x128xf32>
    %13 = arith.addf %10, %12 : vector<256x128xf32>
    %cst_11 = arith.constant 0.000000e+00 : f32
    %14 = vector.broadcast %cst_11 : f32 to vector<256x128xf32>
    %15 = arith.maximumf %13, %14 : vector<256x128xf32>
    %c0_12 = arith.constant 0 : index
    %c0_13 = arith.constant 0 : index
    %16 = vector.load %arg6[%c0_12, %c0_13] : memref<1x128xf32, #tpu.memory_space<vmem>>, vector<1x128xf32>
    %17 = vector.broadcast %16 : vector<1x128xf32> to vector<256x128xf32>
    %18 = arith.mulf %15, %17 : vector<256x128xf32>
    %cst_14 = arith.constant dense<0.000000e+00> : vector<256xf32>
    %19 = vector.multi_reduction <add>, %18, %cst_14 [1] : vector<256x128xf32> to vector<256xf32>
    %20 = vector.shape_cast %19 : vector<256xf32> to vector<256x1xf32>
    %c0_15 = arith.constant 0 : index
    %c0_16 = arith.constant 0 : index
    %21 = vector.load %arg7[%c0_15, %c0_16] : memref<1x1xf32, #tpu.memory_space<vmem>>, vector<1x1xf32>
    %22 = vector.broadcast %21 : vector<1x1xf32> to vector<256x1xf32>
    %23 = arith.addf %20, %22 : vector<256x1xf32>
    %24 = vector.shape_cast %23 : vector<256x1xf32> to vector<256x1xf32>
    %25 = vector.broadcast %24 : vector<256x1xf32> to vector<256x128xf32>
    %c0_17 = arith.constant 0 : index
    %c0_18 = arith.constant 0 : index
    %26 = vector.load %arg8[%c0_17, %c0_18] : memref<256x128xf32, #tpu.memory_space<vmem>>, vector<256x128xf32>
    tpu.vector_store %arg8[%c0_17, %c0_18], %25 {strides = array<i32>} : memref<256x128xf32, #tpu.memory_space<vmem>>, vector<256x128xf32>,
    return
  }
  func.func @transform_0(%arg0: i32) -> (i32, i32) {
    %c0_i32 = arith.constant 0 : i32
    %c0_i32_0 = arith.constant 0 : i32
    return %arg0, %c0_i32 : i32, i32
  }
  func.func @transform_1(%arg0: i32) -> (i32, i32) {
    %c0_i32 = arith.constant 0 : i32
    %c0_i32_0 = arith.constant 0 : i32
    %c0_i32_1 = arith.constant 0 : i32
    return %c0_i32, %c0_i32_0 : i32, i32
  }
  func.func @transform_2(%arg0: i32) -> (i32, i32) {
    %c0_i32 = arith.constant 0 : i32
    %c0_i32_0 = arith.constant 0 : i32
    %c0_i32_1 = arith.constant 0 : i32
    return %c0_i32, %c0_i32_0 : i32, i32
  }
  func.func @transform_3(%arg0: i32) -> (i32, i32) {
    %c0_i32 = arith.constant 0 : i32
    %c0_i32_0 = arith.constant 0 : i32
    %c0_i32_1 = arith.constant 0 : i32
    return %c0_i32, %c0_i32_0 : i32, i32
  }
  func.func @transform_4(%arg0: i32) -> (i32, i32) {
    %c0_i32 = arith.constant 0 : i32
    %c0_i32_0 = arith.constant 0 : i32
    %c0_i32_1 = arith.constant 0 : i32
    return %c0_i32, %c0_i32_0 : i32, i32
  }
  func.func @transform_5(%arg0: i32) -> (i32, i32) {
    %c0_i32 = arith.constant 0 : i32
    %c0_i32_0 = arith.constant 0 : i32
    %c0_i32_1 = arith.constant 0 : i32
    return %c0_i32, %c0_i32_0 : i32, i32
  }
  func.func @transform_6(%arg0: i32) -> (i32, i32) {
    %c0_i32 = arith.constant 0 : i32
    %c0_i32_0 = arith.constant 0 : i32
    %c0_i32_1 = arith.constant 0 : i32
    return %c0_i32, %c0_i32_0 : i32, i32
  }
  func.func @transform_7(%arg0: i32) -> (i32, i32) {
    %c0_i32 = arith.constant 0 : i32
    %c0_i32_0 = arith.constant 0 : i32
    return %arg0, %c0_i32 : i32, i32
  }
}

</mosaic_0001>

<llo_original>
// kernel: tpu_custom_call.1
$region0: #{tpu_custom_call.1}
  #allocation0 [shape = 'u32[]', space=smem, size = 0x4, offset = 0x4, fixed_abs, tag = 'smem constant byte address 0x4 - core index']
  #allocation1 [shape = 'u32[144,128]{1,0:T(1,128)}', space=vmem, size = 0x12000, scoped, tag = 'internal scratch']
  #allocation2 [shape = 'f32[1,1]{1,0:T(1,128)S(1)}', space=vmem, size = 0x200, scoped, tag = 'scoped memory for tpu_custom_call.1']
  %s0 = inlined_call_operand.hbm [shape: bf16[512,128], index: 0, kind: input, shape index: {}]
  %s1 = inlined_call_operand.hbm [shape: bf16[128,256], index: 1, kind: input, shape index: {}]
  %s2 = inlined_call_operand.vmem [shape: f32[1,256], index: 2, kind: input, shape index: {}]
  %s3 = inlined_call_operand.hbm [shape: bf16[256,128], index: 3, kind: input, shape index: {}]
  %s4 = inlined_call_operand.vmem [shape: f32[1,128], index: 4, kind: input, shape index: {}]
  %s5 = inlined_call_operand.vmem [shape: f32[1,128], index: 5, kind: input, shape index: {}]
  %s6 = inlined_call_operand.<no memory space> [shape: f32[1,1], index: 6, kind: input, shape index: {}]
  %s7 = inlined_call_operand.hbm [shape: f32[512,128], index: 7, kind: output, shape index: {}]
  %s8 = sld [smem:[#allocation0]]
  $region73: #{tpu_custom_call.1} parent=0
    _
  %s10 = ssub.s32 1, %s8
  %s11 = scalar_select 0, %s10, %s8
  %v12 = vstv %s6
  %13 = vst [vmem:[#allocation2] sm:$0x1] %v12
  $region1: #{tpu_custom_call.1} parent=0
    #allocation3 [shape = 'u8[131072]{0}', space=vmem, size = 0x20000, scoped, tag = 'input window, operand 0']
    #allocation4 [shape = 's32[2]{0}', space=sflag, size = 0x8, scoped, tag = 'scoped memory for tpu_custom_call.1']
    #allocation5 [shape = 's32[2]{0}', space=sflag, size = 0x8, scoped, tag = 'scoped memory for tpu_custom_call.1']
    #allocation6 [shape = 'u8[65536]{0}', space=vmem, size = 0x10000, scoped, tag = 'input window, operand 1, single buffered']
    #allocation7 [shape = 's32[1]{0}', space=sflag, size = 0x4, scoped, tag = 'scoped memory for tpu_custom_call.1']
    #allocation8 [shape = 'u8[65536]{0}', space=vmem, size = 0x10000, scoped, tag = 'input window, operand 3, single buffered']
    #allocation9 [shape = 'u8[262144]{0}', space=vmem, size = 0x40000, scoped, tag = 'output window, operand 0']
    %14 = vsyncpa [#allocation4], 0
    %s15 = scalar_lea.sflag [#allocation4], 1
    %16 = vsyncpa %s15, 0
    %17 = vsyncpa [#allocation7], 0
    %18 = vsyncpa [#allocation5], 0
    %s19 = scalar_lea.sflag [#allocation5], 1
    %20 = vsyncpa %s19, 0
    loop: start=0, step=1, limit=4
    $region2: #{tpu_custom_call.1} parent=1 // loop_pre_header
      _
    $region3: #{tpu_custom_call.1} parent=1 // loop_header
      %s22 = sphi 0, %s26
      %p23 = scmp.ge.s32.totalorder %s22, 4
      %s32 = sphi 0, %s34
      %s35 = sphi 0, %s32
      %s36 = sphi 0, %s35
      %s52 = sphi 0, %s36
      %s56 = sphi 0, %s56
      %s58 = sphi 0, %s56
      %s59 = sphi 0, %s58
      %s73 = sphi 0, %s59
      %s77 = sphi 0, %s77
      %s79 = sphi 0, %s77
      %s80 = sphi 0, %s79
      %s94 = sphi 0, %s80
      %s98 = sphi 0, %s98
      %s100 = sphi 0, %s98
      %s101 = sphi 0, %s100
      %s115 = sphi 0, %s101
      %s119 = sphi 0, %s119
      %s121 = sphi 0, %s119
      %s122 = sphi 0, %s121
      %s136 = sphi 0, %s122
      %s140 = sphi 0, %s140
      %s142 = sphi 0, %s140
      %s143 = sphi 0, %s142
      %s157 = sphi 0, %s143
      %s161 = sphi 0, %s161
      %s163 = sphi 0, %s161
      %s164 = sphi 0, %s163
      %s178 = sphi 0, %s164
      %s184 = sphi 0, %s186
      %s187 = sphi 0, %s184
      %s188 = sphi 0, %s187
      %s204 = sphi 0, %s188
    $region4: #{tpu_custom_call.1} parent=1 // loop_header_branch
      %25 = sbr.rel (%p23) target = $region8
    $region5: #{tpu_custom_call.1} parent=1 // loop_body
      %s27 = ssub.s32 %s22, 1
      %s28 = ssub.s32 %s22, 2
      %s29 = sadd.s32 %s22, 1
      %s30 = ssub.s32 %s22, %s29
      %p31 = scmp.eq.s32.totalorder %s30, 0
      %s33 = sadd.s32 %s32, 1
      %s34 = scalar_select %p31, %s32, %s33
      %p37 = pneg %p31
      %p38 = scmp.eq.s32.totalorder %s22, 1
      %p39 = por %p37, %p38
      %p40 = scmp.ne.s32.totalorder %s32, %s35
      %p41 = scmp.eq.s32.totalorder %s22, 0
      %p42 = por %p40, %p41
      %p43 = scmp.ne.s32.totalorder %s32, %s35
      %p44 = scmp.eq.s32.totalorder %s27, 1
      %p45 = por %p43, %p44
      %p46 = scmp.ne.s32.totalorder %s35, %s36
      %p47 = scmp.eq.s32.totalorder %s27, 0
      %p48 = por %p46, %p47
      %p49 = scmp.ne.s32.totalorder %s35, %s36
      %p50 = scmp.eq.s32.totalorder %s28, 1
      %p51 = por %p49, %p50
      %p53 = scmp.ne.s32.totalorder %s36, %s52
      %p54 = scmp.eq.s32.totalorder %s28, 0
      %p55 = por %p53, %p54
      %s57 = sadd.s32 %s56, 1
      %p60 = scmp.eq.s32.totalorder %s22, 1
      %p61 = scmp.ne.s32.totalorder %s56, %s58
      %p62 = scmp.eq.s32.totalorder %s22, 0
      %p63 = por %p61, %p62
      %p64 = scmp.ne.s32.totalorder %s56, %s58
      %p65 = scmp.eq.s32.totalorder %s27, 1
      %p66 = por %p64, %p65
      %p67 = scmp.ne.s32.totalorder %s58, %s59
      %p68 = scmp.eq.s32.totalorder %s27, 0
      %p69 = por %p67, %p68
      %p70 = scmp.ne.s32.totalorder %s58, %s59
      %p71 = scmp.eq.s32.totalorder %s28, 1
      %p72 = por %p70, %p71
      %p74 = scmp.ne.s32.totalorder %s59, %s73
      %p75 = scmp.eq.s32.totalorder %s28, 0
      %p76 = por %p74, %p75
      %s78 = sadd.s32 %s77, 1
      %p81 = scmp.eq.s32.totalorder %s22, 1
      %p82 = scmp.ne.s32.totalorder %s77, %s79
      %p83 = scmp.eq.s32.totalorder %s22, 0
      %p84 = por %p82, %p83
      %p85 = scmp.ne.s32.totalorder %s77, %s79
      %p86 = scmp.eq.s32.totalorder %s27, 1
      %p87 = por %p85, %p86
      %p88 = scmp.ne.s32.totalorder %s79, %s80
      %p89 = scmp.eq.s32.totalorder %s27, 0
      %p90 = por %p88, %p89
      %p91 = scmp.ne.s32.totalorder %s79, %s80
      %p92 = scmp.eq.s32.totalorder %s28, 1
      %p93 = por %p91, %p92
      %p95 = scmp.ne.s32.totalorder %s80, %s94
      %p96 = scmp.eq.s32.totalorder %s28, 0
      %p97 = por %p95, %p96
      %s99 = sadd.s32 %s98, 1
      %p102 = scmp.eq.s32.totalorder %s22, 1
      %p103 = scmp.ne.s32.totalorder %s98, %s100
      %p104 = scmp.eq.s32.totalorder %s22, 0
      %p105 = por %p103, %p104
      %p106 = scmp.ne.s32.totalorder %s98, %s100
      %p107 = scmp.eq.s32.totalorder %s27, 1
      %p108 = por %p106, %p107
      %p109 = scmp.ne.s32.totalorder %s100, %s101
      %p110 = scmp.eq.s32.totalorder %s27, 0
      %p111 = por %p109, %p110
      %p112 = scmp.ne.s32.totalorder %s100, %s101
      %p113 = scmp.eq.s32.totalorder %s28, 1
      %p114 = por %p112, %p113
      %p116 = scmp.ne.s32.totalorder %s101, %s115
      %p117 = scmp.eq.s32.totalorder %s28, 0
      %p118 = por %p116, %p117
      %s120 = sadd.s32 %s119, 1
      %p123 = scmp.eq.s32.totalorder %s22, 1
      %p124 = scmp.ne.s32.totalorder %s119, %s121
      %p125 = scmp.eq.s32.totalorder %s22, 0
      %p126 = por %p124, %p125
      %p127 = scmp.ne.s32.totalorder %s119, %s121
      %p128 = scmp.eq.s32.totalorder %s27, 1
      %p129 = por %p127, %p128
      %p130 = scmp.ne.s32.totalorder %s121, %s122
      %p131 = scmp.eq.s32.totalorder %s27, 0
      %p132 = por %p130, %p131
      %p133 = scmp.ne.s32.totalorder %s121, %s122
      %p134 = scmp.eq.s32.totalorder %s28, 1
      %p135 = por %p133, %p134
      %p137 = scmp.ne.s32.totalorder %s122, %s136
      %p138 = scmp.eq.s32.totalorder %s28, 0
      %p139 = por %p137, %p138
      %s141 = sadd.s32 %s140, 1
      %p144 = scmp.eq.s32.totalorder %s22, 1
      %p145 = scmp.ne.s32.totalorder %s140, %s142
      %p146 = scmp.eq.s32.totalorder %s22, 0
      %p147 = por %p145, %p146
      %p148 = scmp.ne.s32.totalorder %s140, %s142
      %p149 = scmp.eq.s32.totalorder %s27, 1
      %p150 = por %p148, %p149
      %p151 = scmp.ne.s32.totalorder %s142, %s143
      %p152 = scmp.eq.s32.totalorder %s27, 0
      %p153 = por %p151, %p152
      %p154 = scmp.ne.s32.totalorder %s142, %s143
      %p155 = scmp.eq.s32.totalorder %s28, 1
      %p156 = por %p154, %p155
      %p158 = scmp.ne.s32.totalorder %s143, %s157
      %p159 = scmp.eq.s32.totalorder %s28, 0
      %p160 = por %p158, %p159
      %s162 = sadd.s32 %s161, 1
      %p165 = scmp.eq.s32.totalorder %s22, 1
      %p166 = scmp.ne.s32.totalorder %s161, %s163
      %p167 = scmp.eq.s32.totalorder %s22, 0
      %p168 = por %p166, %p167
      %p169 = scmp.ne.s32.totalorder %s161, %s163
      %p170 = scmp.eq.s32.totalorder %s27, 1
      %p171 = por %p169, %p170
      %p172 = scmp.ne.s32.totalorder %s163, %s164
      %p173 = scmp.eq.s32.totalorder %s27, 0
      %p174 = por %p172, %p173
      %p175 = scmp.ne.s32.totalorder %s163, %s164
      %p176 = scmp.eq.s32.totalorder %s28, 1
      %p177 = por %p175, %p176
      %p179 = scmp.ne.s32.totalorder %s164, %s178
      %p180 = scmp.eq.s32.totalorder %s28, 0
      %p181 = por %p179, %p180
      %s182 = ssub.s32 %s22, %s29
      %p183 = scmp.eq.s32.totalorder %s182, 0
      %s185 = sadd.s32 %s184, 1
      %s186 = scalar_select %p183, %s184, %s185
      %p189 = pneg %p183
      %p190 = scmp.eq.s32.totalorder %s22, 1
      %p191 = por %p189, %p190
      %p192 = scmp.ne.s32.totalorder %s184, %s187
      %p193 = scmp.eq.s32.totalorder %s22, 0
      %p194 = por %p192, %p193
      %p195 = scmp.ne.s32.totalorder %s184, %s187
      %p196 = scmp.eq.s32.totalorder %s27, 1
      %p197 = por %p195, %p196
      %p198 = scmp.ne.s32.totalorder %s187, %s188
      %p199 = scmp.eq.s32.totalorder %s27, 0
      %p200 = por %p198, %p199
      %p201 = scmp.ne.s32.totalorder %s187, %s188
      %p202 = scmp.eq.s32.totalorder %s28, 1
      %p203 = por %p201, %p202
      %p205 = scmp.ne.s32.totalorder %s188, %s204
      %p206 = scmp.eq.s32.totalorder %s28, 0
      %p207 = por %p205, %p206
      %p208 = scmp.le.s32.totalorder 1, %s22
      %p209 = scmp.lt.s32.totalorder %s22, 3
      %p210 = pnand %p208, %p209
      %p211 = pneg %p210
      // Predicated region
      $region9: #{tpu_custom_call.1} parent=5 // pred_check
        _
      $region10: #{tpu_custom_call.1} parent=5 // pred_check_branch
        %213 = sbr.rel (%p210) target = $region12
      $region11: #{tpu_custom_call.1} parent=5 // pred_region
        %s214 = ssub.s32 %s22, 1
        // Predicated region
        $region13: #{tpu_custom_call.1} parent=11 // pred_check
          %p215 = pneg %p69
        $region14: #{tpu_custom_call.1} parent=11 // pred_check_branch
          %217 = sbr.rel (%p215) target = $region16
        $region15: #{tpu_custom_call.1} parent=11 // pred_region
          %s219 = ssub.s32 2048, 2048
          %220 = vsyncadd [#allocation7], %s219
          %s221 = sshll.u32 [#allocation6], 4
          %s222 = int_to_ptr.vmem [resolvable:$true] %s221
          %227 = dma.hbm_to_vmem [thread:$0]  %s1, 2048, %s222, [#allocation7], 128, 128, 8
        $region16: #{tpu_custom_call.1} parent=11 // pred_fallthru
          _
        // Predicated region
        $region17: #{tpu_custom_call.1} parent=11 // pred_check
          %p228 = pneg %p90
        $region18: #{tpu_custom_call.1} parent=11 // pred_check_branch
          %230 = sbr.rel (%p228) target = $region20
        $region19: #{tpu_custom_call.1} parent=11 // pred_region
          _
        $region20: #{tpu_custom_call.1} parent=11 // pred_fallthru
          _
        // Predicated region
        $region21: #{tpu_custom_call.1} parent=11 // pred_check
          %p231 = pneg %p111
        $region22: #{tpu_custom_call.1} parent=11 // pred_check_branch
          %233 = sbr.rel (%p231) target = $region24
        $region23: #{tpu_custom_call.1} parent=11 // pred_region
          %s235 = ssub.s32 2048, 2048
          %236 = vsyncadd [#allocation7], %s235
          %s237 = sshll.u32 [#allocation8], 4
          %s238 = int_to_ptr.vmem [resolvable:$true] %s237
          %243 = dma.hbm_to_vmem [thread:$0]  %s3, 2048, %s238, [#allocation7], 64, 64, 4
        $region24: #{tpu_custom_call.1} parent=11 // pred_fallthru
          _
        // Predicated region
        $region25: #{tpu_custom_call.1} parent=11 // pred_check
          %p244 = pneg %p132
        $region26: #{tpu_custom_call.1} parent=11 // pred_check_branch
          %246 = sbr.rel (%p244) target = $region28
        $region27: #{tpu_custom_call.1} parent=11 // pred_region
          _
        $region28: #{tpu_custom_call.1} parent=11 // pred_fallthru
          _
        // Predicated region
        $region29: #{tpu_custom_call.1} parent=11 // pred_check
          %p247 = pneg %p153
        $region30: #{tpu_custom_call.1} parent=11 // pred_check_branch
          %249 = sbr.rel (%p247) target = $region32
        $region31: #{tpu_custom_call.1} parent=11 // pred_region
          _
        $region32: #{tpu_custom_call.1} parent=11 // pred_fallthru
          _
        // Predicated region
        $region33: #{tpu_custom_call.1} parent=11 // pred_check
          %p250 = pneg %p174
        $region34: #{tpu_custom_call.1} parent=11 // pred_check_branch
          %252 = sbr.rel (%p250) target = $region36
        $region35: #{tpu_custom_call.1} parent=11 // pred_region
          _
        $region36: #{tpu_custom_call.1} parent=11 // pred_fallthru
          _
      $region12: #{tpu_custom_call.1} parent=5 // pred_fallthru
        _
      %p253 = scmp.lt.s32.totalorder %s22, 2
      // Predicated region
      $region37: #{tpu_custom_call.1} parent=5 // pred_check
        %p254 = pneg %p253
      $region38: #{tpu_custom_call.1} parent=5 // pred_check_branch
        %256 = sbr.rel (%p254) target = $region40
      $region39: #{tpu_custom_call.1} parent=5 // pred_region
        // Predicated region
        $region41: #{tpu_custom_call.1} parent=39 // pred_check
          %p257 = pneg %p42
        $region42: #{tpu_custom_call.1} parent=39 // pred_check_branch
          %259 = sbr.rel (%p257) target = $region44
        $region43: #{tpu_custom_call.1} parent=39 // pred_region
          %s260 = sand.u32 %s32, 1
          %s261 = scalar_lea.sflag [#allocation4], %s260
          %s262 = sand.u32 %s32, 1
          %s263 = smul.addr %s262, 128
          %s264 = scalar_lea.vmem [#allocation3], %s263
          %s265 = smul.u32 32, %s22
          %s267 = ssub.s32 2048, 2048
          %268 = vsyncadd %s261, %s267
          %s269 = smul.addr %s265, 64
          %s270 = scalar_lea.hbm %s0, %s269
          %s271 = sshll.u32 %s264, 4
          %s272 = int_to_ptr.vmem [resolvable:$true] %s271
          %277 = dma.hbm_to_vmem [thread:$0]  %s270, 2048, %s272, %s261, 64, 64, 4
        $region44: #{tpu_custom_call.1} parent=39 // pred_fallthru
          _
      $region40: #{tpu_custom_call.1} parent=5 // pred_fallthru
        _
      %p278 = scmp.le.s32.totalorder 1, %s22
      %p279 = scmp.lt.s32.totalorder %s22, 3
      %p280 = pnand %p278, %p279
      %p281 = pneg %p280
      // Predicated region
      $region45: #{tpu_custom_call.1} parent=5 // pred_check
        _
      $region46: #{tpu_custom_call.1} parent=5 // pred_check_branch
        %283 = sbr.rel (%p280) target = $region48
      $region47: #{tpu_custom_call.1} parent=5 // pred_region
        %s284 = ssub.s32 %s22, 1
        %s285 = sand.u32 %s35, 1
        %s286 = scalar_lea.sflag [#allocation4], %s285
        %s287 = sand.u32 %s35, 1
        %s288 = smul.addr %s287, 128
        %s289 = scalar_lea.vmem [#allocation3], %s288
        // Predicated region
        $region49: #{tpu_custom_call.1} parent=47 // pred_check
          %p290 = pneg %p48
        $region50: #{tpu_custom_call.1} parent=47 // pred_check_branch
          %292 = sbr.rel (%p290) target = $region52
        $region51: #{tpu_custom_call.1} parent=47 // pred_region
          %293 = dma.done %s286, 2048
        $region52: #{tpu_custom_call.1} parent=47 // pred_fallthru
          _
        // Predicated region
        $region53: #{tpu_custom_call.1} parent=47 // pred_check
          %p294 = pneg %p69
        $region54: #{tpu_custom_call.1} parent=47 // pred_check_branch
          %296 = sbr.rel (%p294) target = $region56
        $region55: #{tpu_custom_call.1} parent=47 // pred_region
          %297 = dma.done [#allocation7], 2048
        $region56: #{tpu_custom_call.1} parent=47 // pred_fallthru
          _
        // Predicated region
        $region57: #{tpu_custom_call.1} parent=47 // pred_check
          %p298 = pneg %p111
        $region58: #{tpu_custom_call.1} parent=47 // pred_check_branch
          %300 = sbr.rel (%p298) target = $region60
        $region59: #{tpu_custom_call.1} parent=47 // pred_region
          %301 = dma.done [#allocation7], 2048
        $region60: #{tpu_custom_call.1} parent=47 // pred_fallthru
          _
        %s302 = sand.u32 %s35, 1
        %s303 = scalar_lea.sflag [#allocation4], %s302
        %s304 = sand.u32 %s35, 1
        %s305 = smul.addr %s304, 128
        %s306 = scalar_lea.vmem [#allocation3], %s305
        %p307 = pneg %p48
        %p308 = pneg %p45
        %p309 = pneg %p69
        %p310 = pneg %p66
        %p311 = pneg %p90
        %p312 = pneg %p87
        %p313 = pneg %p111
        %p314 = pneg %p108
        %p315 = pneg %p132
        %p316 = pneg %p129
        %p317 = pneg %p153
        %p318 = pneg %p150
        %p319 = pneg %p174
        %p320 = pneg %p171
        %p321 = pneg %p200
        %p322 = pneg %p197
        %s323 = sand.u32 %s187, 1
        %s324 = scalar_lea.sflag [#allocation5], %s323
        %s325 = sand.u32 %s187, 1
        %s326 = smul.addr %s325, 256
        %s327 = scalar_lea.vmem [#allocation9], %s326
        %s328 = smul.u32 32, %s27
        %s329 = smul.u32 32, %s27
        %v331 = vld [vmem:[%s289] sm:$0xf]
        %v332 = vld [vmem:[%s289 + $0x4] sm:$0xf]
        %v333 = vld [vmem:[%s289 + $0x8] sm:$0xf]
        %v334 = vld [vmem:[%s289 + $0xc] sm:$0xf]
        %v335 = vld [vmem:[%s289 + $0x10] sm:$0xf]
        %v336 = vld [vmem:[%s289 + $0x14] sm:$0xf]
        %v337 = vld [vmem:[%s289 + $0x18] sm:$0xf]
        %v338 = vld [vmem:[%s289 + $0x1c] sm:$0xf]
        %v339 = vld [vmem:[%s289 + $0x20] sm:$0xf]
        %v340 = vld [vmem:[%s289 + $0x24] sm:$0xf]
        %v341 = vld [vmem:[%s289 + $0x28] sm:$0xf]
        %v342 = vld [vmem:[%s289 + $0x2c] sm:$0xf]
        %v343 = vld [vmem:[%s289 + $0x30] sm:$0xf]
        %v344 = vld [vmem:[%s289 + $0x34] sm:$0xf]
        %v345 = vld [vmem:[%s289 + $0x38] sm:$0xf]
        %v346 = vld [vmem:[%s289 + $0x3c] sm:$0xf]
        %v347 = vld [vmem:[%s289 + $0x40] sm:$0xf]
        %v348 = vld [vmem:[%s289 + $0x44] sm:$0xf]
        %v349 = vld [vmem:[%s289 + $0x48] sm:$0xf]
        %v350 = vld [vmem:[%s289 + $0x4c] sm:$0xf]
        %v351 = vld [vmem:[%s289 + $0x50] sm:$0xf]
        %v352 = vld [vmem:[%s289 + $0x54] sm:$0xf]
        %v353 = vld [vmem:[%s289 + $0x58] sm:$0xf]
        %v354 = vld [vmem:[%s289 + $0x5c] sm:$0xf]
        %v355 = vld [vmem:[%s289 + $0x60] sm:$0xf]
        %v356 = vld [vmem:[%s289 + $0x64] sm:$0xf]
        %v357 = vld [vmem:[%s289 + $0x68] sm:$0xf]
        %v358 = vld [vmem:[%s289 + $0x6c] sm:$0xf]
        %v359 = vld [vmem:[%s289 + $0x70] sm:$0xf]
        %v360 = vld [vmem:[%s289 + $0x74] sm:$0xf]
        %v361 = vld [vmem:[%s289 + $0x78] sm:$0xf]
        %v362 = vld [vmem:[%s289 + $0x7c] sm:$0xf]
        %v363 = vld [vmem:[#allocation6] sm:$0xff]
        %v364 = vld [vmem:[#allocation6 + $0x8] sm:$0xff]
        %v365 = vld [vmem:[#allocation6 + $0x10] sm:$0xff]
        %v366 = vld [vmem:[#allocation6 + $0x18] sm:$0xff]
        %v367 = vld [vmem:[#allocation6 + $0x20] sm:$0xff]
        %v368 = vld [vmem:[#allocation6 + $0x28] sm:$0xff]
        %v369 = vld [vmem:[#allocation6 + $0x30] sm:$0xff]
        %v370 = vld [vmem:[#allocation6 + $0x38] sm:$0xff]
        %v371 = vld [vmem:[#allocation6 + $0x40] sm:$0xff]
        %v372 = vld [vmem:[#allocation6 + $0x48] sm:$0xff]
        %v373 = vld [vmem:[#allocation6 + $0x50] sm:$0xff]
        %v374 = vld [vmem:[#allocation6 + $0x58] sm:$0xff]
        %v375 = vld [vmem:[#allocation6 + $0x60] sm:$0xff]
        %v376 = vld [vmem:[#allocation6 + $0x68] sm:$0xff]
        %v377 = vld [vmem:[#allocation6 + $0x70] sm:$0xff]
        %v378 = vld [vmem:[#allocation6 + $0x78] sm:$0xff]
        %v379 = vld [vmem:[%s2] sm:$0x3]
        %v381 = vlaneseq
        %v382 = vshrl.u32 %v381, 7
        %v383 = vsub.s32 0, %v382
        %v384 = vrot.slane %v379, %v383
        %v385 = vlaneseq
        %v386 = vshrl.u32 %v385, 7
        %v387 = vsub.s32 1, %v386
        %v388 = vrot.slane %v379, %v387
        %v423 = vunpack.c.l.b16 %v331
        %v424 = vunpack.c.l.b16 %v332
        %v425 = vunpack.c.l.b16 %v333
        %v426 = vunpack.c.l.b16 %v334
        %v427 = vunpack.c.l.b16 %v335
        %v428 = vunpack.c.l.b16 %v336
        %v429 = vunpack.c.l.b16 %v337
        %v430 = vunpack.c.l.b16 %v338
        %v431 = vunpack.c.l.b16 %v339
        %v432 = vunpack.c.l.b16 %v340
        %v433 = vunpack.c.l.b16 %v341
        %v434 = vunpack.c.l.b16 %v342
        %v435 = vunpack.c.l.b16 %v343
        %v436 = vunpack.c.l.b16 %v344
        %v437 = vunpack.c.l.b16 %v345
        %v438 = vunpack.c.l.b16 %v346
        %v439 = vunpack.c.l.b16 %v347
        %v440 = vunpack.c.l.b16 %v348
        %v441 = vunpack.c.l.b16 %v349
        %v442 = vunpack.c.l.b16 %v350
        %v443 = vunpack.c.l.b16 %v351
        %v444 = vunpack.c.l.b16 %v352
        %v445 = vunpack.c.l.b16 %v353
        %v446 = vunpack.c.l.b16 %v354
        %v447 = vunpack.c.l.b16 %v355
        %v448 = vunpack.c.l.b16 %v356
        %v449 = vunpack.c.l.b16 %v357
        %v450 = vunpack.c.l.b16 %v358
        %v451 = vunpack.c.l.b16 %v359
        %v452 = vunpack.c.l.b16 %v360
        %v453 = vunpack.c.l.b16 %v361
        %v454 = vunpack.c.l.b16 %v362
        %v455 = vpack.c.b16 %v424, %v423
        %v456 = vpack.c.b16 %v426, %v425
        %v457 = vpack.c.b16 %v428, %v427
        %v458 = vpack.c.b16 %v430, %v429
        %v459 = vpack.c.b16 %v432, %v431
        %v460 = vpack.c.b16 %v434, %v433
        %v461 = vpack.c.b16 %v436, %v435
        %v462 = vpack.c.b16 %v438, %v437
        %v463 = vpack.c.b16 %v440, %v439
        %v464 = vpack.c.b16 %v442, %v441
        %v465 = vpack.c.b16 %v444, %v443
        %v466 = vpack.c.b16 %v446, %v445
        %v467 = vpack.c.b16 %v448, %v447
        %v468 = vpack.c.b16 %v450, %v449
        %v469 = vpack.c.b16 %v452, %v451
        %v470 = vpack.c.b16 %v454, %v453
        %v503 = vunpack.c.l.b16 %v363
        %v504 = vunpack.c.h.b16 %v363
        %v505 = vunpack.c.l.b16 %v364
        %v506 = vunpack.c.h.b16 %v364
        %v507 = vunpack.c.l.b16 %v365
        %v508 = vunpack.c.h.b16 %v365
        %v509 = vunpack.c.l.b16 %v366
        %v510 = vunpack.c.h.b16 %v366
        %v511 = vunpack.c.l.b16 %v367
        %v512 = vunpack.c.h.b16 %v367
        %v513 = vunpack.c.l.b16 %v368
        %v514 = vunpack.c.h.b16 %v368
        %v515 = vunpack.c.l.b16 %v369
        %v516 = vunpack.c.h.b16 %v369
        %v517 = vunpack.c.l.b16 %v370
        %v518 = vunpack.c.h.b16 %v370
        %v519 = vunpack.c.l.b16 %v371
        %v520 = vunpack.c.h.b16 %v371
        %v521 = vunpack.c.l.b16 %v372
        %v522 = vunpack.c.h.b16 %v372
        %v523 = vunpack.c.l.b16 %v373
        %v524 = vunpack.c.h.b16 %v373
        %v525 = vunpack.c.l.b16 %v374
        %v526 = vunpack.c.h.b16 %v374
        %v527 = vunpack.c.l.b16 %v375
        %v528 = vunpack.c.h.b16 %v375
        %v529 = vunpack.c.l.b16 %v376
        %v530 = vunpack.c.h.b16 %v376
        %v531 = vunpack.c.l.b16 %v377
        %v532 = vunpack.c.h.b16 %v377
        %v533 = vunpack.c.l.b16 %v378
        %v534 = vunpack.c.h.b16 %v378
        %v535 = vpack.c.b16 %v505, %v503
        %v536 = vpack.c.b16 %v506, %v504
        %v537 = vpack.c.b16 %v509, %v507
        %v538 = vpack.c.b16 %v510, %v508
        %v539 = vpack.c.b16 %v513, %v511
        %v540 = vpack.c.b16 %v514, %v512
        %v541 = vpack.c.b16 %v517, %v515
        %v542 = vpack.c.b16 %v518, %v516
        %v543 = vpack.c.b16 %v521, %v519
        %v544 = vpack.c.b16 %v522, %v520
        %v545 = vpack.c.b16 %v525, %v523
        %v546 = vpack.c.b16 %v526, %v524
        %v547 = vpack.c.b16 %v529, %v527
        %v548 = vpack.c.b16 %v530, %v528
        %v549 = vpack.c.b16 %v533, %v531
        %v550 = vpack.c.b16 %v534, %v532
        %567 = vmatprep.subr.bf16.mxu0 %v550
        %568 = vmatpush1.bf16.msra.mxu0 %v549
        %569 = vmatprep.subr.bf16.mxu0 %v548
        %570 = vmatpush1.bf16.msra.mxu0 %v547
        %571 = vmatprep.subr.bf16.mxu0 %v546
        %572 = vmatpush1.bf16.msra.mxu0 %v545
        %573 = vmatprep.subr.bf16.mxu0 %v544
        %574 = vmatpush1.bf16.msra.mxu0 %v543
        %575 = vmatprep.subr.bf16.mxu0 %v542
        %576 = vmatpush1.bf16.msra.mxu0 %v541
        %577 = vmatprep.subr.bf16.mxu0 %v540
        %578 = vmatpush1.bf16.msra.mxu0 %v539
        %579 = vmatprep.subr.bf16.mxu0 %v538
        %580 = vmatpush1.bf16.msra.mxu0 %v537
        %581 = vmatprep.subr.bf16.mxu0 %v536
        %582 = vmatpush1.bf16.msra.mxu0 %v535
        %583 = vmatprep.subr.bf16.mxu0 0
        %584 = vmatpush2.bf16.msra.mxu0 0
        %585 = vmatprep.subr.bf16.mxu0 0
        %586 = vmatpush2.bf16.msra.mxu0 0
        %587 = vmatprep.subr.bf16.mxu0 0
        %588 = vmatpush2.bf16.msra.mxu0 0
        %589 = vmatprep.subr.bf16.mxu0 0
        %590 = vmatpush2.bf16.msra.mxu0 0
        %591 = vmatprep.subr.bf16.mxu0 0
        %592 = vmatpush2.bf16.msra.mxu0 0
        %593 = vmatprep.subr.bf16.mxu0 0
        %594 = vmatpush2.bf16.msra.mxu0 0
        %595 = vmatprep.subr.bf16.mxu0 0
        %596 = vmatpush2.bf16.msra.mxu0 0
        %597 = vmatprep.subr.bf16.mxu0 0
        %598 = vmatpush2.bf16.msra.mxu0 0
        %599 = vmatprep.mubr.bf16.mxu0 0
        %600 = vmatmul.mubr.bf16.gmra.mxu0 %v455
        %v601 = vpop.f32.mrf.mxu0
        %v602 = vadd.f32 %v384, %v601
        %v603 = vpop.f32.mrf.mxu0
        %v604 = vadd.f32 %v388, %v603
        %v605 = vpop.f32.mrf.mxu0
        %v606 = vadd.f32 %v384, %v605
        %v607 = vpop.f32.mrf.mxu0
        %v608 = vadd.f32 %v388, %v607
        %609 = vmatprep.mubr.bf16.mxu0 0
        %610 = vmatmul.mubr.bf16.gmra.mxu0 %v456
        %v611 = vpop.f32.mrf.mxu0
        %v612 = vadd.f32 %v384, %v611
        %v613 = vpop.f32.mrf.mxu0
        %v614 = vadd.f32 %v388, %v613
        %v615 = vpop.f32.mrf.mxu0
        %v616 = vadd.f32 %v384, %v615
        %v617 = vpop.f32.mrf.mxu0
        %v618 = vadd.f32 %v388, %v617
        %619 = vmatprep.mubr.bf16.mxu0 0
        %620 = vmatmul.mubr.bf16.gmra.mxu0 %v457
        %v621 = vpop.f32.mrf.mxu0
        %v622 = vadd.f32 %v384, %v621
        %v623 = vpop.f32.mrf.mxu0
        %v624 = vadd.f32 %v388, %v623
        %v625 = vpop.f32.mrf.mxu0
        %v626 = vadd.f32 %v384, %v625
        %v627 = vpop.f32.mrf.mxu0
        %v628 = vadd.f32 %v388, %v627
        %629 = vmatprep.mubr.bf16.mxu0 0
        %630 = vmatmul.mubr.bf16.gmra.mxu0 %v458
        %v631 = vpop.f32.mrf.mxu0
        %v632 = vadd.f32 %v384, %v631
        %v633 = vpop.f32.mrf.mxu0
        %v634 = vadd.f32 %v388, %v633
        %v635 = vpop.f32.mrf.mxu0
        %v636 = vadd.f32 %v384, %v635
        %v637 = vpop.f32.mrf.mxu0
        %v638 = vadd.f32 %v388, %v637
        %639 = vmatprep.mubr.bf16.mxu0 0
        %640 = vmatmul.mubr.bf16.gmra.mxu0 %v459
        %v641 = vpop.f32.mrf.mxu0
        %v642 = vadd.f32 %v384, %v641
        %v643 = vpop.f32.mrf.mxu0
        %v644 = vadd.f32 %v388, %v643
        %v645 = vpop.f32.mrf.mxu0
        %v646 = vadd.f32 %v384, %v645
        %v647 = vpop.f32.mrf.mxu0
        %v648 = vadd.f32 %v388, %v647
        %649 = vmatprep.mubr.bf16.mxu0 0
        %650 = vmatmul.mubr.bf16.gmra.mxu0 %v460
        %v651 = vpop.f32.mrf.mxu0
        %v652 = vadd.f32 %v384, %v651
        %v653 = vpop.f32.mrf.mxu0
        %v654 = vadd.f32 %v388, %v653
        %v655 = vpop.f32.mrf.mxu0
        %v656 = vadd.f32 %v384, %v655
        %v657 = vpop.f32.mrf.mxu0
        %v658 = vadd.f32 %v388, %v657
        %659 = vmatprep.mubr.bf16.mxu0 0
        %660 = vmatmul.mubr.bf16.gmra.mxu0 %v461
        %v661 = vpop.f32.mrf.mxu0
        %v662 = vadd.f32 %v384, %v661
        %v663 = vpop.f32.mrf.mxu0
        %v664 = vadd.f32 %v388, %v663
        %v665 = vpop.f32.mrf.mxu0
        %v666 = vadd.f32 %v384, %v665
        %v667 = vpop.f32.mrf.mxu0
        %v668 = vadd.f32 %v388, %v667
        %669 = vmatprep.mubr.bf16.mxu0 0
        %670 = vmatmul.mubr.bf16.gmra.mxu0 %v462
        %v671 = vpop.f32.mrf.mxu0
        %v672 = vadd.f32 %v384, %v671
        %v673 = vpop.f32.mrf.mxu0
        %v674 = vadd.f32 %v388, %v673
        %v675 = vpop.f32.mrf.mxu0
        %v676 = vadd.f32 %v384, %v675
        %v677 = vpop.f32.mrf.mxu0
        %v678 = vadd.f32 %v388, %v677
        %679 = vmatprep.mubr.bf16.mxu0 0
        %680 = vmatmul.mubr.bf16.gmra.mxu0 %v463
        %v681 = vpop.f32.mrf.mxu0
        %v682 = vadd.f32 %v384, %v681
        %v683 = vpop.f32.mrf.mxu0
        %v684 = vadd.f32 %v388, %v683
        %v685 = vpop.f32.mrf.mxu0
        %v686 = vadd.f32 %v384, %v685
        %v687 = vpop.f32.mrf.mxu0
        %v688 = vadd.f32 %v388, %v687
        %689 = vmatprep.mubr.bf16.mxu0 0
        %690 = vmatmul.mubr.bf16.gmra.mxu0 %v464
        %v691 = vpop.f32.mrf.mxu0
        %v692 = vadd.f32 %v384, %v691
        %v693 = vpop.f32.mrf.mxu0
        %v694 = vadd.f32 %v388, %v693
        %v695 = vpop.f32.mrf.mxu0
        %v696 = vadd.f32 %v384, %v695
        %v697 = vpop.f32.mrf.mxu0
        %v698 = vadd.f32 %v388, %v697
        %699 = vmatprep.mubr.bf16.mxu0 0
        %700 = vmatmul.mubr.bf16.gmra.mxu0 %v465
        %v701 = vpop.f32.mrf.mxu0
        %v702 = vadd.f32 %v384, %v701
        %v703 = vpop.f32.mrf.mxu0
        %v704 = vadd.f32 %v388, %v703
        %v705 = vpop.f32.mrf.mxu0
        %v706 = vadd.f32 %v384, %v705
        %v707 = vpop.f32.mrf.mxu0
        %v708 = vadd.f32 %v388, %v707
        %709 = vmatprep.mubr.bf16.mxu0 0
        %710 = vmatmul.mubr.bf16.gmra.mxu0 %v466
        %v711 = vpop.f32.mrf.mxu0
        %v712 = vadd.f32 %v384, %v711
        %v713 = vpop.f32.mrf.mxu0
        %v714 = vadd.f32 %v388, %v713
        %v715 = vpop.f32.mrf.mxu0
        %v716 = vadd.f32 %v384, %v715
        %v717 = vpop.f32.mrf.mxu0
        %v718 = vadd.f32 %v388, %v717
        %719 = vmatprep.mubr.bf16.mxu0 0
        %720 = vmatmul.mubr.bf16.gmra.mxu0 %v467
        %v721 = vpop.f32.mrf.mxu0
        %v722 = vadd.f32 %v384, %v721
        %v723 = vpop.f32.mrf.mxu0
        %v724 = vadd.f32 %v388, %v723
        %v725 = vpop.f32.mrf.mxu0
        %v726 = vadd.f32 %v384, %v725
        %v727 = vpop.f32.mrf.mxu0
        %v728 = vadd.f32 %v388, %v727
        %729 = vmatprep.mubr.bf16.mxu0 0
        %730 = vmatmul.mubr.bf16.gmra.mxu0 %v468
        %v731 = vpop.f32.mrf.mxu0
        %v732 = vadd.f32 %v384, %v731
        %v733 = vpop.f32.mrf.mxu0
        %v734 = vadd.f32 %v388, %v733
        %v735 = vpop.f32.mrf.mxu0
        %v736 = vadd.f32 %v384, %v735
        %v737 = vpop.f32.mrf.mxu0
        %v738 = vadd.f32 %v388, %v737
        %739 = vmatprep.mubr.bf16.mxu0 0
        %740 = vmatmul.mubr.bf16.gmra.mxu0 %v469
        %v741 = vpop.f32.mrf.mxu0
        %v742 = vadd.f32 %v384, %v741
        %v743 = vpop.f32.mrf.mxu0
        %v744 = vadd.f32 %v388, %v743
        %v745 = vpop.f32.mrf.mxu0
        %v746 = vadd.f32 %v384, %v745
        %v747 = vpop.f32.mrf.mxu0
        %v748 = vadd.f32 %v388, %v747
        %749 = vmatprep.mubr.bf16.mxu0 0
        %750 = vmatmul.mubr.bf16.gmra.mxu0 %v470
        %v751 = vpop.f32.mrf.mxu0
        %v752 = vadd.f32 %v384, %v751
        %v753 = vpop.f32.mrf.mxu0
        %v754 = vadd.f32 %v388, %v753
        %v755 = vpop.f32.mrf.mxu0
        %v756 = vadd.f32 %v384, %v755
        %v757 = vpop.f32.mrf.mxu0
        %v758 = vadd.f32 %v388, %v757
        %759 = vdwg.mxu0
        %v760 = vmax.f32 %v602, 0.0
        %v761 = vmax.f32 %v604, 0.0
        %v762 = vmax.f32 %v606, 0.0
        %v763 = vmax.f32 %v608, 0.0
        %v764 = vmax.f32 %v612, 0.0
        %v765 = vmax.f32 %v614, 0.0
        %v766 = vmax.f32 %v616, 0.0
        %v767 = vmax.f32 %v618, 0.0
        %v768 = vmax.f32 %v622, 0.0
        %v769 = vmax.f32 %v624, 0.0
        %v770 = vmax.f32 %v626, 0.0
        %v771 = vmax.f32 %v628, 0.0
        %v772 = vmax.f32 %v632, 0.0
        %v773 = vmax.f32 %v634, 0.0
        %v774 = vmax.f32 %v636, 0.0
        %v775 = vmax.f32 %v638, 0.0
        %v776 = vmax.f32 %v642, 0.0
        %v777 = vmax.f32 %v644, 0.0
        %v778 = vmax.f32 %v646, 0.0
        %v779 = vmax.f32 %v648, 0.0
        %v780 = vmax.f32 %v652, 0.0
        %v781 = vmax.f32 %v654, 0.0
        %v782 = vmax.f32 %v656, 0.0
        %v783 = vmax.f32 %v658, 0.0
        %v784 = vmax.f32 %v662, 0.0
        %v785 = vmax.f32 %v664, 0.0
        %v786 = vmax.f32 %v666, 0.0
        %v787 = vmax.f32 %v668, 0.0
        %v788 = vmax.f32 %v672, 0.0
        %v789 = vmax.f32 %v674, 0.0
        %v790 = vmax.f32 %v676, 0.0
        %v791 = vmax.f32 %v678, 0.0
        %v792 = vmax.f32 %v682, 0.0
        %v793 = vmax.f32 %v684, 0.0
        %v794 = vmax.f32 %v686, 0.0
        %v795 = vmax.f32 %v688, 0.0
        %v796 = vmax.f32 %v692, 0.0
        %v797 = vmax.f32 %v694, 0.0
        %v798 = vmax.f32 %v696, 0.0
        %v799 = vmax.f32 %v698, 0.0
        %v800 = vmax.f32 %v702, 0.0
        %v801 = vmax.f32 %v704, 0.0
        %v802 = vmax.f32 %v706, 0.0
        %v803 = vmax.f32 %v708, 0.0
        %v804 = vmax.f32 %v712, 0.0
        %v805 = vmax.f32 %v714, 0.0
        %v806 = vmax.f32 %v716, 0.0
        %v807 = vmax.f32 %v718, 0.0
        %v808 = vmax.f32 %v722, 0.0
        %v809 = vmax.f32 %v724, 0.0
        %v810 = vmax.f32 %v726, 0.0
        %v811 = vmax.f32 %v728, 0.0
        %v812 = vmax.f32 %v732, 0.0
        %v813 = vmax.f32 %v734, 0.0
        %v814 = vmax.f32 %v736, 0.0
        %v815 = vmax.f32 %v738, 0.0
        %v816 = vmax.f32 %v742, 0.0
        %v817 = vmax.f32 %v744, 0.0
        %v818 = vmax.f32 %v746, 0.0
        %v819 = vmax.f32 %v748, 0.0
        %v820 = vmax.f32 %v752, 0.0
        %v821 = vmax.f32 %v754, 0.0
        %v822 = vmax.f32 %v756, 0.0
        %v823 = vmax.f32 %v758, 0.0
        %v824 = vpack.c.bf16 %v762, %v760
        %v825 = vpack.c.bf16 %v763, %v761
        %v826 = vpack.c.bf16 %v766, %v764
        %v827 = vpack.c.bf16 %v767, %v765
        %v828 = vpack.c.bf16 %v770, %v768
        %v829 = vpack.c.bf16 %v771, %v769
        %v830 = vpack.c.bf16 %v774, %v772
        %v831 = vpack.c.bf16 %v775, %v773
        %v832 = vpack.c.bf16 %v778, %v776
        %v833 = vpack.c.bf16 %v779, %v777
        %v834 = vpack.c.bf16 %v782, %v780
        %v835 = vpack.c.bf16 %v783, %v781
        %v836 = vpack.c.bf16 %v786, %v784
        %v837 = vpack.c.bf16 %v787, %v785
        %v838 = vpack.c.bf16 %v790, %v788
        %v839 = vpack.c.bf16 %v791, %v789
        %v840 = vpack.c.bf16 %v794, %v792
        %v841 = vpack.c.bf16 %v795, %v793
        %v842 = vpack.c.bf16 %v798, %v796
        %v843 = vpack.c.bf16 %v799, %v797
        %v844 = vpack.c.bf16 %v802, %v800
        %v845 = vpack.c.bf16 %v803, %v801
        %v846 = vpack.c.bf16 %v806, %v804
        %v847 = vpack.c.bf16 %v807, %v805
        %v848 = vpack.c.bf16 %v810, %v808
        %v849 = vpack.c.bf16 %v811, %v809
        %v850 = vpack.c.bf16 %v814, %v812
        %v851 = vpack.c.bf16 %v815, %v813
        %v852 = vpack.c.bf16 %v818, %v816
        %v853 = vpack.c.bf16 %v819, %v817
        %v854 = vpack.c.bf16 %v822, %v820
        %v855 = vpack.c.bf16 %v823, %v821
        %v856 = vld [vmem:[#allocation8] sm:$0xf]
        %v857 = vld [vmem:[#allocation8 + $0x4] sm:$0xf]
        %v858 = vld [vmem:[#allocation8 + $0x8] sm:$0xf]
        %v859 = vld [vmem:[#allocation8 + $0xc] sm:$0xf]
        %v860 = vld [vmem:[#allocation8 + $0x10] sm:$0xf]
        %v861 = vld [vmem:[#allocation8 + $0x14] sm:$0xf]
        %v862 = vld [vmem:[#allocation8 + $0x18] sm:$0xf]
        %v863 = vld [vmem:[#allocation8 + $0x1c] sm:$0xf]
        %v864 = vld [vmem:[#allocation8 + $0x20] sm:$0xf]
        %v865 = vld [vmem:[#allocation8 + $0x24] sm:$0xf]
        %v866 = vld [vmem:[#allocation8 + $0x28] sm:$0xf]
        %v867 = vld [vmem:[#allocation8 + $0x2c] sm:$0xf]
        %v868 = vld [vmem:[#allocation8 + $0x30] sm:$0xf]
        %v869 = vld [vmem:[#allocation8 + $0x34] sm:$0xf]
        %v870 = vld [vmem:[#allocation8 + $0x38] sm:$0xf]
        %v871 = vld [vmem:[#allocation8 + $0x3c] sm:$0xf]
        %v872 = vld [vmem:[#allocation8 + $0x40] sm:$0xf]
        %v873 = vld [vmem:[#allocation8 + $0x44] sm:$0xf]
        %v874 = vld [vmem:[#allocation8 + $0x48] sm:$0xf]
        %v875 = vld [vmem:[#allocation8 + $0x4c] sm:$0xf]
        %v876 = vld [vmem:[#allocation8 + $0x50] sm:$0xf]
        %v877 = vld [vmem:[#allocation8 + $0x54] sm:$0xf]
        %v878 = vld [vmem:[#allocation8 + $0x58] sm:$0xf]
        %v879 = vld [vmem:[#allocation8 + $0x5c] sm:$0xf]
        %v880 = vld [vmem:[#allocation8 + $0x60] sm:$0xf]
        %v881 = vld [vmem:[#allocation8 + $0x64] sm:$0xf]
        %v882 = vld [vmem:[#allocation8 + $0x68] sm:$0xf]
        %v883 = vld [vmem:[#allocation8 + $0x6c] sm:$0xf]
        %v884 = vld [vmem:[#allocation8 + $0x70] sm:$0xf]
        %v885 = vld [vmem:[#allocation8 + $0x74] sm:$0xf]
        %v886 = vld [vmem:[#allocation8 + $0x78] sm:$0xf]
        %v887 = vld [vmem:[#allocation8 + $0x7c] sm:$0xf]
        %v888 = vld [vmem:[%s4] sm:$0x1]
        %v890 = vlaneseq
        %v891 = vshrl.u32 %v890, 7
        %v892 = vsub.s32 0, %v891
        %v893 = vrot.slane %v888, %v892
        %v927 = vunpack.c.l.b16 %v856
        %v928 = vunpack.c.l.b16 %v857
        %v929 = vunpack.c.l.b16 %v858
        %v930 = vunpack.c.l.b16 %v859
        %v931 = vunpack.c.l.b16 %v860
        %v932 = vunpack.c.l.b16 %v861
        %v933 = vunpack.c.l.b16 %v862
        %v934 = vunpack.c.l.b16 %v863
        %v935 = vunpack.c.l.b16 %v864
        %v936 = vunpack.c.l.b16 %v865
        %v937 = vunpack.c.l.b16 %v866
        %v938 = vunpack.c.l.b16 %v867
        %v939 = vunpack.c.l.b16 %v868
        %v940 = vunpack.c.l.b16 %v869
        %v941 = vunpack.c.l.b16 %v870
        %v942 = vunpack.c.l.b16 %v871
        %v943 = vunpack.c.l.b16 %v872
        %v944 = vunpack.c.l.b16 %v873
        %v945 = vunpack.c.l.b16 %v874
        %v946 = vunpack.c.l.b16 %v875
        %v947 = vunpack.c.l.b16 %v876
        %v948 = vunpack.c.l.b16 %v877
        %v949 = vunpack.c.l.b16 %v878
        %v950 = vunpack.c.l.b16 %v879
        %v951 = vunpack.c.l.b16 %v880
        %v952 = vunpack.c.l.b16 %v881
        %v953 = vunpack.c.l.b16 %v882
        %v954 = vunpack.c.l.b16 %v883
        %v955 = vunpack.c.l.b16 %v884
        %v956 = vunpack.c.l.b16 %v885
        %v957 = vunpack.c.l.b16 %v886
        %v958 = vunpack.c.l.b16 %v887
        %v959 = vpack.c.b16 %v928, %v927
        %v960 = vpack.c.b16 %v930, %v929
        %v961 = vpack.c.b16 %v932, %v931
        %v962 = vpack.c.b16 %v934, %v933
        %v963 = vpack.c.b16 %v936, %v935
        %v964 = vpack.c.b16 %v938, %v937
        %v965 = vpack.c.b16 %v940, %v939
        %v966 = vpack.c.b16 %v942, %v941
        %v967 = vpack.c.b16 %v944, %v943
        %v968 = vpack.c.b16 %v946, %v945
        %v969 = vpack.c.b16 %v948, %v947
        %v970 = vpack.c.b16 %v950, %v949
        %v971 = vpack.c.b16 %v952, %v951
        %v972 = vpack.c.b16 %v954, %v953
        %v973 = vpack.c.b16 %v956, %v955
        %v974 = vpack.c.b16 %v958, %v957
        %991 = vmatprep.subr.bf16.mxu0 0
        %992 = vmatpush1.bf16.msra.mxu0 %v966
        %993 = vmatprep.subr.bf16.mxu0 0
        %994 = vmatpush1.bf16.msra.mxu0 %v965
        %995 = vmatprep.subr.bf16.mxu0 0
        %996 = vmatpush1.bf16.msra.mxu0 %v964
        %997 = vmatprep.subr.bf16.mxu0 0
        %998 = vmatpush1.bf16.msra.mxu0 %v963
        %999 = vmatprep.subr.bf16.mxu0 0
        %1000 = vmatpush1.bf16.msra.mxu0 %v962
        %1001 = vmatprep.subr.bf16.mxu0 0
        %1002 = vmatpush1.bf16.msra.mxu0 %v961
        %1003 = vmatprep.subr.bf16.mxu0 0
        %1004 = vmatpush1.bf16.msra.mxu0 %v960
        %1005 = vmatprep.subr.bf16.mxu0 0
        %1006 = vmatpush1.bf16.msra.mxu0 %v959
        %1007 = vmatprep.subr.bf16.mxu0 0
        %1008 = vmatpush2.bf16.msra.mxu0 %v974
        %1009 = vmatprep.subr.bf16.mxu0 0
        %1010 = vmatpush2.bf16.msra.mxu0 %v973
        %1011 = vmatprep.subr.bf16.mxu0 0
        %1012 = vmatpush2.bf16.msra.mxu0 %v972
        %1013 = vmatprep.subr.bf16.mxu0 0
        %1014 = vmatpush2.bf16.msra.mxu0 %v971
        %1015 = vmatprep.subr.bf16.mxu0 0
        %1016 = vmatpush2.bf16.msra.mxu0 %v970
        %1017 = vmatprep.subr.bf16.mxu0 0
        %1018 = vmatpush2.bf16.msra.mxu0 %v969
        %1019 = vmatprep.subr.bf16.mxu0 0
        %1020 = vmatpush2.bf16.msra.mxu0 %v968
        %1021 = vmatprep.subr.bf16.mxu0 0
        %1022 = vmatpush2.bf16.msra.mxu0 %v967
        %1023 = vmatprep.mubr.bf16.mxu0 %v825
        %1024 = vmatmul.mubr.bf16.gmra.mxu0 %v824
        %v1025 = vpop.f32.mrf.mxu0
        %v1026 = vadd.f32 %v893, %v1025
        %v1027 = vpop.f32.mrf.mxu0
        %v1028 = vpop.f32.mrf.mxu0
        %v1029 = vadd.f32 %v893, %v1028
        %v1030 = vpop.f32.mrf.mxu0
        %1031 = vmatprep.mubr.bf16.mxu0 %v827
        %1032 = vmatmul.mubr.bf16.gmra.mxu0 %v826
        %v1033 = vpop.f32.mrf.mxu0
        %v1034 = vadd.f32 %v893, %v1033
        %v1035 = vpop.f32.mrf.mxu0
        %v1036 = vpop.f32.mrf.mxu0
        %v1037 = vadd.f32 %v893, %v1036
        %v1038 = vpop.f32.mrf.mxu0
        %1039 = vmatprep.mubr.bf16.mxu0 %v829
        %1040 = vmatmul.mubr.bf16.gmra.mxu0 %v828
        %v1041 = vpop.f32.mrf.mxu0
        %v1042 = vadd.f32 %v893, %v1041
        %v1043 = vpop.f32.mrf.mxu0
        %v1044 = vpop.f32.mrf.mxu0
        %v1045 = vadd.f32 %v893, %v1044
        %v1046 = vpop.f32.mrf.mxu0
        %1047 = vmatprep.mubr.bf16.mxu0 %v831
        %1048 = vmatmul.mubr.bf16.gmra.mxu0 %v830
        %v1049 = vpop.f32.mrf.mxu0
        %v1050 = vadd.f32 %v893, %v1049
        %v1051 = vpop.f32.mrf.mxu0
        %v1052 = vpop.f32.mrf.mxu0
        %v1053 = vadd.f32 %v893, %v1052
        %v1054 = vpop.f32.mrf.mxu0
        %1055 = vmatprep.mubr.bf16.mxu0 %v833
        %1056 = vmatmul.mubr.bf16.gmra.mxu0 %v832
        %v1057 = vpop.f32.mrf.mxu0
        %v1058 = vadd.f32 %v893, %v1057
        %v1059 = vpop.f32.mrf.mxu0
        %v1060 = vpop.f32.mrf.mxu0
        %v1061 = vadd.f32 %v893, %v1060
        %v1062 = vpop.f32.mrf.mxu0
        %1063 = vmatprep.mubr.bf16.mxu0 %v835
        %1064 = vmatmul.mubr.bf16.gmra.mxu0 %v834
        %v1065 = vpop.f32.mrf.mxu0
        %v1066 = vadd.f32 %v893, %v1065
        %v1067 = vpop.f32.mrf.mxu0
        %v1068 = vpop.f32.mrf.mxu0
        %v1069 = vadd.f32 %v893, %v1068
        %v1070 = vpop.f32.mrf.mxu0
        %1071 = vmatprep.mubr.bf16.mxu0 %v837
        %1072 = vmatmul.mubr.bf16.gmra.mxu0 %v836
        %v1073 = vpop.f32.mrf.mxu0
        %v1074 = vadd.f32 %v893, %v1073
        %v1075 = vpop.f32.mrf.mxu0
        %v1076 = vpop.f32.mrf.mxu0
        %v1077 = vadd.f32 %v893, %v1076
        %v1078 = vpop.f32.mrf.mxu0
        %1079 = vmatprep.mubr.bf16.mxu0 %v839
        %1080 = vmatmul.mubr.bf16.gmra.mxu0 %v838
        %v1081 = vpop.f32.mrf.mxu0
        %v1082 = vadd.f32 %v893, %v1081
        %v1083 = vpop.f32.mrf.mxu0
        %v1084 = vpop.f32.mrf.mxu0
        %v1085 = vadd.f32 %v893, %v1084
        %v1086 = vpop.f32.mrf.mxu0
        %1087 = vmatprep.mubr.bf16.mxu0 %v841
        %1088 = vmatmul.mubr.bf16.gmra.mxu0 %v840
        %v1089 = vpop.f32.mrf.mxu0
        %v1090 = vadd.f32 %v893, %v1089
        %v1091 = vpop.f32.mrf.mxu0
        %v1092 = vpop.f32.mrf.mxu0
        %v1093 = vadd.f32 %v893, %v1092
        %v1094 = vpop.f32.mrf.mxu0
        %1095 = vmatprep.mubr.bf16.mxu0 %v843
        %1096 = vmatmul.mubr.bf16.gmra.mxu0 %v842
        %v1097 = vpop.f32.mrf.mxu0
        %v1098 = vadd.f32 %v893, %v1097
        %v1099 = vpop.f32.mrf.mxu0
        %v1100 = vpop.f32.mrf.mxu0
        %v1101 = vadd.f32 %v893, %v1100
        %v1102 = vpop.f32.mrf.mxu0
        %1103 = vmatprep.mubr.bf16.mxu0 %v845
        %1104 = vmatmul.mubr.bf16.gmra.mxu0 %v844
        %v1105 = vpop.f32.mrf.mxu0
        %v1106 = vadd.f32 %v893, %v1105
        %v1107 = vpop.f32.mrf.mxu0
        %v1108 = vpop.f32.mrf.mxu0
        %v1109 = vadd.f32 %v893, %v1108
        %v1110 = vpop.f32.mrf.mxu0
        %1111 = vmatprep.mubr.bf16.mxu0 %v847
        %1112 = vmatmul.mubr.bf16.gmra.mxu0 %v846
        %v1113 = vpop.f32.mrf.mxu0
        %v1114 = vadd.f32 %v893, %v1113
        %v1115 = vpop.f32.mrf.mxu0
        %v1116 = vpop.f32.mrf.mxu0
        %v1117 = vadd.f32 %v893, %v1116
        %v1118 = vpop.f32.mrf.mxu0
        %1119 = vmatprep.mubr.bf16.mxu0 %v849
        %1120 = vmatmul.mubr.bf16.gmra.mxu0 %v848
        %v1121 = vpop.f32.mrf.mxu0
        %v1122 = vadd.f32 %v893, %v1121
        %v1123 = vpop.f32.mrf.mxu0
        %v1124 = vpop.f32.mrf.mxu0
        %v1125 = vadd.f32 %v893, %v1124
        %v1126 = vpop.f32.mrf.mxu0
        %1127 = vmatprep.mubr.bf16.mxu0 %v851
        %1128 = vmatmul.mubr.bf16.gmra.mxu0 %v850
        %v1129 = vpop.f32.mrf.mxu0
        %v1130 = vadd.f32 %v893, %v1129
        %v1131 = vpop.f32.mrf.mxu0
        %v1132 = vpop.f32.mrf.mxu0
        %v1133 = vadd.f32 %v893, %v1132
        %v1134 = vpop.f32.mrf.mxu0
        %1135 = vmatprep.mubr.bf16.mxu0 %v853
        %1136 = vmatmul.mubr.bf16.gmra.mxu0 %v852
        %v1137 = vpop.f32.mrf.mxu0
        %v1138 = vadd.f32 %v893, %v1137
        %v1139 = vpop.f32.mrf.mxu0
        %v1140 = vpop.f32.mrf.mxu0
        %v1141 = vadd.f32 %v893, %v1140
        %v1142 = vpop.f32.mrf.mxu0
        %1143 = vmatprep.mubr.bf16.mxu0 %v855
        %1144 = vmatmul.mubr.bf16.gmra.mxu0 %v854
        %v1145 = vpop.f32.mrf.mxu0
        %v1146 = vadd.f32 %v893, %v1145
        %v1147 = vpop.f32.mrf.mxu0
        %v1148 = vpop.f32.mrf.mxu0
        %v1149 = vadd.f32 %v893, %v1148
        %v1150 = vpop.f32.mrf.mxu0
        %1151 = vdwg.mxu0
        %v1152 = vmax.f32 %v1026, 0.0
        %v1153 = vmax.f32 %v1029, 0.0
        %v1154 = vmax.f32 %v1034, 0.0
        %v1155 = vmax.f32 %v1037, 0.0
        %v1156 = vmax.f32 %v1042, 0.0
        %v1157 = vmax.f32 %v1045, 0.0
        %v1158 = vmax.f32 %v1050, 0.0
        %v1159 = vmax.f32 %v1053, 0.0
        %v1160 = vmax.f32 %v1058, 0.0
        %v1161 = vmax.f32 %v1061, 0.0
        %v1162 = vmax.f32 %v1066, 0.0
        %v1163 = vmax.f32 %v1069, 0.0
        %v1164 = vmax.f32 %v1074, 0.0
        %v1165 = vmax.f32 %v1077, 0.0
        %v1166 = vmax.f32 %v1082, 0.0
        %v1167 = vmax.f32 %v1085, 0.0
        %v1168 = vmax.f32 %v1090, 0.0
        %v1169 = vmax.f32 %v1093, 0.0
        %v1170 = vmax.f32 %v1098, 0.0
        %v1171 = vmax.f32 %v1101, 0.0
        %v1172 = vmax.f32 %v1106, 0.0
        %v1173 = vmax.f32 %v1109, 0.0
        %v1174 = vmax.f32 %v1114, 0.0
        %v1175 = vmax.f32 %v1117, 0.0
        %v1176 = vmax.f32 %v1122, 0.0
        %v1177 = vmax.f32 %v1125, 0.0
        %v1178 = vmax.f32 %v1130, 0.0
        %v1179 = vmax.f32 %v1133, 0.0
        %v1180 = vmax.f32 %v1138, 0.0
        %v1181 = vmax.f32 %v1141, 0.0
        %v1182 = vmax.f32 %v1146, 0.0
        %v1183 = vmax.f32 %v1149, 0.0
        %v1184 = vld [vmem:[%s5] sm:$0x1]
        %v1186 = vlaneseq
        %v1187 = vshrl.u32 %v1186, 7
        %v1188 = vsub.s32 0, %v1187
        %v1189 = vrot.slane %v1184, %v1188
        %v1191 = vmul.f32 %v1152, %v1189
        %v1192 = vmul.f32 %v1153, %v1189
        %v1193 = vmul.f32 %v1154, %v1189
        %v1194 = vmul.f32 %v1155, %v1189
        %v1195 = vmul.f32 %v1156, %v1189
        %v1196 = vmul.f32 %v1157, %v1189
        %v1197 = vmul.f32 %v1158, %v1189
        %v1198 = vmul.f32 %v1159, %v1189
        %v1199 = vmul.f32 %v1160, %v1189
        %v1200 = vmul.f32 %v1161, %v1189
        %v1201 = vmul.f32 %v1162, %v1189
        %v1202 = vmul.f32 %v1163, %v1189
        %v1203 = vmul.f32 %v1164, %v1189
        %v1204 = vmul.f32 %v1165, %v1189
        %v1205 = vmul.f32 %v1166, %v1189
        %v1206 = vmul.f32 %v1167, %v1189
        %v1207 = vmul.f32 %v1168, %v1189
        %v1208 = vmul.f32 %v1169, %v1189
        %v1209 = vmul.f32 %v1170, %v1189
        %v1210 = vmul.f32 %v1171, %v1189
        %v1211 = vmul.f32 %v1172, %v1189
        %v1212 = vmul.f32 %v1173, %v1189
        %v1213 = vmul.f32 %v1174, %v1189
        %v1214 = vmul.f32 %v1175, %v1189
        %v1215 = vmul.f32 %v1176, %v1189
        %v1216 = vmul.f32 %v1177, %v1189
        %v1217 = vmul.f32 %v1178, %v1189
        %v1218 = vmul.f32 %v1179, %v1189
        %v1219 = vmul.f32 %v1180, %v1189
        %v1220 = vmul.f32 %v1181, %v1189
        %v1221 = vmul.f32 %v1182, %v1189
        %v1222 = vmul.f32 %v1183, %v1189
        %1223 = vadd.xlane.f32.xlu0 %v1191
        %v1224 = vpop.xlane.xlu0 %1223
        %1225 = vadd.xlane.f32.xlu0 %v1192
        %v1226 = vpop.xlane.xlu0 %1225
        %1227 = vadd.xlane.f32.xlu0 %v1193
        %v1228 = vpop.xlane.xlu0 %1227
        %1229 = vadd.xlane.f32.xlu0 %v1194
        %v1230 = vpop.xlane.xlu0 %1229
        %1231 = vadd.xlane.f32.xlu0 %v1195
        %v1232 = vpop.xlane.xlu0 %1231
        %1233 = vadd.xlane.f32.xlu0 %v1196
        %v1234 = vpop.xlane.xlu0 %1233
        %1235 = vadd.xlane.f32.xlu0 %v1197
        %v1236 = vpop.xlane.xlu0 %1235
        %1237 = vadd.xlane.f32.xlu0 %v1198
        %v1238 = vpop.xlane.xlu0 %1237
        %1239 = vadd.xlane.f32.xlu0 %v1199
        %v1240 = vpop.xlane.xlu0 %1239
        %1241 = vadd.xlane.f32.xlu0 %v1200
        %v1242 = vpop.xlane.xlu0 %1241
        %1243 = vadd.xlane.f32.xlu0 %v1201
        %v1244 = vpop.xlane.xlu0 %1243
        %1245 = vadd.xlane.f32.xlu0 %v1202
        %v1246 = vpop.xlane.xlu0 %1245
        %1247 = vadd.xlane.f32.xlu0 %v1203
        %v1248 = vpop.xlane.xlu0 %1247
        %1249 = vadd.xlane.f32.xlu0 %v1204
        %v1250 = vpop.xlane.xlu0 %1249
        %1251 = vadd.xlane.f32.xlu0 %v1205
        %v1252 = vpop.xlane.xlu0 %1251
        %1253 = vadd.xlane.f32.xlu0 %v1206
        %v1254 = vpop.xlane.xlu0 %1253
        %1255 = vadd.xlane.f32.xlu0 %v1207
        %v1256 = vpop.xlane.xlu0 %1255
        %1257 = vadd.xlane.f32.xlu0 %v1208
        %v1258 = vpop.xlane.xlu0 %1257
        %1259 = vadd.xlane.f32.xlu0 %v1209
        %v1260 = vpop.xlane.xlu0 %1259
        %1261 = vadd.xlane.f32.xlu0 %v1210
        %v1262 = vpop.xlane.xlu0 %1261
        %1263 = vadd.xlane.f32.xlu0 %v1211
        %v1264 = vpop.xlane.xlu0 %1263
        %1265 = vadd.xlane.f32.xlu0 %v1212
        %v1266 = vpop.xlane.xlu0 %1265
        %1267 = vadd.xlane.f32.xlu0 %v1213
        %v1268 = vpop.xlane.xlu0 %1267
        %1269 = vadd.xlane.f32.xlu0 %v1214
        %v1270 = vpop.xlane.xlu0 %1269
        %1271 = vadd.xlane.f32.xlu0 %v1215
        %v1272 = vpop.xlane.xlu0 %1271
        %1273 = vadd.xlane.f32.xlu0 %v1216
        %v1274 = vpop.xlane.xlu0 %1273
        %1275 = vadd.xlane.f32.xlu0 %v1217
        %v1276 = vpop.xlane.xlu0 %1275
        %1277 = vadd.xlane.f32.xlu0 %v1218
        %v1278 = vpop.xlane.xlu0 %1277
        %1279 = vadd.xlane.f32.xlu0 %v1219
        %v1280 = vpop.xlane.xlu0 %1279
        %1281 = vadd.xlane.f32.xlu0 %v1220
        %v1282 = vpop.xlane.xlu0 %1281
        %1283 = vadd.xlane.f32.xlu0 %v1221
        %v1284 = vpop.xlane.xlu0 %1283
        %1285 = vadd.xlane.f32.xlu0 %v1222
        %v1286 = vpop.xlane.xlu0 %1285
        %v1287 = vld [vmem:[#allocation2] sm:$0x1]
        %v1289 = vlaneseq
        %v1290 = vshrl.u32 %v1289, 7
        %v1291 = vsub.s32 0, %v1290
        %v1292 = vrot.slane %v1287, %v1291
        %v1294 = vadd.f32 %v1224, %v1292
        %v1295 = vadd.f32 %v1226, %v1292
        %v1296 = vadd.f32 %v1228, %v1292
        %v1297 = vadd.f32 %v1230, %v1292
        %v1298 = vadd.f32 %v1232, %v1292
        %v1299 = vadd.f32 %v1234, %v1292
        %v1300 = vadd.f32 %v1236, %v1292
        %v1301 = vadd.f32 %v1238, %v1292
        %v1302 = vadd.f32 %v1240, %v1292
        %v1303 = vadd.f32 %v1242, %v1292
        %v1304 = vadd.f32 %v1244, %v1292
        %v1305 = vadd.f32 %v1246, %v1292
        %v1306 = vadd.f32 %v1248, %v1292
        %v1307 = vadd.f32 %v1250, %v1292
        %v1308 = vadd.f32 %v1252, %v1292
        %v1309 = vadd.f32 %v1254, %v1292
        %v1310 = vadd.f32 %v1256, %v1292
        %v1311 = vadd.f32 %v1258, %v1292
        %v1312 = vadd.f32 %v1260, %v1292
        %v1313 = vadd.f32 %v1262, %v1292
        %v1314 = vadd.f32 %v1264, %v1292
        %v1315 = vadd.f32 %v1266, %v1292
        %v1316 = vadd.f32 %v1268, %v1292
        %v1317 = vadd.f32 %v1270, %v1292
        %v1318 = vadd.f32 %v1272, %v1292
        %v1319 = vadd.f32 %v1274, %v1292
        %v1320 = vadd.f32 %v1276, %v1292
        %v1321 = vadd.f32 %v1278, %v1292
        %v1322 = vadd.f32 %v1280, %v1292
        %v1323 = vadd.f32 %v1282, %v1292
        %v1324 = vadd.f32 %v1284, %v1292
        %v1325 = vadd.f32 %v1286, %v1292
        %1327 = vset.pattern.permute.xlu0 0
        %1328 = vperm.xlu0 %1327, %v1294
        %v1329 = vpop.permute.xlu0 %1328
        %1332 = vset.pattern.permute.xlu0 0
        %1333 = vperm.xlu0 %1332, %v1295
        %v1334 = vpop.permute.xlu0 %1333
        %1337 = vset.pattern.permute.xlu0 0
        %1338 = vperm.xlu0 %1337, %v1296
        %v1339 = vpop.permute.xlu0 %1338
        %1342 = vset.pattern.permute.xlu0 0
        %1343 = vperm.xlu0 %1342, %v1297
        %v1344 = vpop.permute.xlu0 %1343
        %1347 = vset.pattern.permute.xlu0 0
        %1348 = vperm.xlu0 %1347, %v1298
        %v1349 = vpop.permute.xlu0 %1348
        %1352 = vset.pattern.permute.xlu0 0
        %1353 = vperm.xlu0 %1352, %v1299
        %v1354 = vpop.permute.xlu0 %1353
        %1357 = vset.pattern.permute.xlu0 0
        %1358 = vperm.xlu0 %1357, %v1300
        %v1359 = vpop.permute.xlu0 %1358
        %1362 = vset.pattern.permute.xlu0 0
        %1363 = vperm.xlu0 %1362, %v1301
        %v1364 = vpop.permute.xlu0 %1363
        %1367 = vset.pattern.permute.xlu0 0
        %1368 = vperm.xlu0 %1367, %v1302
        %v1369 = vpop.permute.xlu0 %1368
        %1372 = vset.pattern.permute.xlu0 0
        %1373 = vperm.xlu0 %1372, %v1303
        %v1374 = vpop.permute.xlu0 %1373
        %1377 = vset.pattern.permute.xlu0 0
        %1378 = vperm.xlu0 %1377, %v1304
        %v1379 = vpop.permute.xlu0 %1378
        %1382 = vset.pattern.permute.xlu0 0
        %1383 = vperm.xlu0 %1382, %v1305
        %v1384 = vpop.permute.xlu0 %1383
        %1387 = vset.pattern.permute.xlu0 0
        %1388 = vperm.xlu0 %1387, %v1306
        %v1389 = vpop.permute.xlu0 %1388
        %1392 = vset.pattern.permute.xlu0 0
        %1393 = vperm.xlu0 %1392, %v1307
        %v1394 = vpop.permute.xlu0 %1393
        %1397 = vset.pattern.permute.xlu0 0
        %1398 = vperm.xlu0 %1397, %v1308
        %v1399 = vpop.permute.xlu0 %1398
        %1402 = vset.pattern.permute.xlu0 0
        %1403 = vperm.xlu0 %1402, %v1309
        %v1404 = vpop.permute.xlu0 %1403
        %1407 = vset.pattern.permute.xlu0 0
        %1408 = vperm.xlu0 %1407, %v1310
        %v1409 = vpop.permute.xlu0 %1408
        %1412 = vset.pattern.permute.xlu0 0
        %1413 = vperm.xlu0 %1412, %v1311
        %v1414 = vpop.permute.xlu0 %1413
        %1417 = vset.pattern.permute.xlu0 0
        %1418 = vperm.xlu0 %1417, %v1312
        %v1419 = vpop.permute.xlu0 %1418
        %1422 = vset.pattern.permute.xlu0 0
        %1423 = vperm.xlu0 %1422, %v1313
        %v1424 = vpop.permute.xlu0 %1423
        %1427 = vset.pattern.permute.xlu0 0
        %1428 = vperm.xlu0 %1427, %v1314
        %v1429 = vpop.permute.xlu0 %1428
        %1432 = vset.pattern.permute.xlu0 0
        %1433 = vperm.xlu0 %1432, %v1315
        %v1434 = vpop.permute.xlu0 %1433
        %1437 = vset.pattern.permute.xlu0 0
        %1438 = vperm.xlu0 %1437, %v1316
        %v1439 = vpop.permute.xlu0 %1438
        %1442 = vset.pattern.permute.xlu0 0
        %1443 = vperm.xlu0 %1442, %v1317
        %v1444 = vpop.permute.xlu0 %1443
        %1447 = vset.pattern.permute.xlu0 0
        %1448 = vperm.xlu0 %1447, %v1318
        %v1449 = vpop.permute.xlu0 %1448
        %1452 = vset.pattern.permute.xlu0 0
        %1453 = vperm.xlu0 %1452, %v1319
        %v1454 = vpop.permute.xlu0 %1453
        %1457 = vset.pattern.permute.xlu0 0
        %1458 = vperm.xlu0 %1457, %v1320
        %v1459 = vpop.permute.xlu0 %1458
        %1462 = vset.pattern.permute.xlu0 0
        %1463 = vperm.xlu0 %1462, %v1321
        %v1464 = vpop.permute.xlu0 %1463
        %1467 = vset.pattern.permute.xlu0 0
        %1468 = vperm.xlu0 %1467, %v1322
        %v1469 = vpop.permute.xlu0 %1468
        %1472 = vset.pattern.permute.xlu0 0
        %1473 = vperm.xlu0 %1472, %v1323
        %v1474 = vpop.permute.xlu0 %1473
        %1477 = vset.pattern.permute.xlu0 0
        %1478 = vperm.xlu0 %1477, %v1324
        %v1479 = vpop.permute.xlu0 %1478
        %1482 = vset.pattern.permute.xlu0 0
        %1483 = vperm.xlu0 %1482, %v1325
        %v1484 = vpop.permute.xlu0 %1483
        %1486 = vst [vmem:[%s327] sm:$0xff] %v1329
        %1487 = vst [vmem:[%s327 + $0x8] sm:$0xff] %v1334
        %1488 = vst [vmem:[%s327 + $0x10] sm:$0xff] %v1339
        %1489 = vst [vmem:[%s327 + $0x18] sm:$0xff] %v1344
        %1490 = vst [vmem:[%s327 + $0x20] sm:$0xff] %v1349
        %1491 = vst [vmem:[%s327 + $0x28] sm:$0xff] %v1354
        %1492 = vst [vmem:[%s327 + $0x30] sm:$0xff] %v1359
        %1493 = vst [vmem:[%s327 + $0x38] sm:$0xff] %v1364
        %1494 = vst [vmem:[%s327 + $0x40] sm:$0xff] %v1369
        %1495 = vst [vmem:[%s327 + $0x48] sm:$0xff] %v1374
        %1496 = vst [vmem:[%s327 + $0x50] sm:$0xff] %v1379
        %1497 = vst [vmem:[%s327 + $0x58] sm:$0xff] %v1384
        %1498 = vst [vmem:[%s327 + $0x60] sm:$0xff] %v1389
        %1499 = vst [vmem:[%s327 + $0x68] sm:$0xff] %v1394
        %1500 = vst [vmem:[%s327 + $0x70] sm:$0xff] %v1399
        %1501 = vst [vmem:[%s327 + $0x78] sm:$0xff] %v1404
        %1502 = vst [vmem:[%s327 + $0x80] sm:$0xff] %v1409
        %1503 = vst [vmem:[%s327 + $0x88] sm:$0xff] %v1414
        %1504 = vst [vmem:[%s327 + $0x90] sm:$0xff] %v1419
        %1505 = vst [vmem:[%s327 + $0x98] sm:$0xff] %v1424
        %1506 = vst [vmem:[%s327 + $0xa0] sm:$0xff] %v1429
        %1507 = vst [vmem:[%s327 + $0xa8] sm:$0xff] %v1434
        %1508 = vst [vmem:[%s327 + $0xb0] sm:$0xff] %v1439
        %1509 = vst [vmem:[%s327 + $0xb8] sm:$0xff] %v1444
        %1510 = vst [vmem:[%s327 + $0xc0] sm:$0xff] %v1449
        %1511 = vst [vmem:[%s327 + $0xc8] sm:$0xff] %v1454
        %1512 = vst [vmem:[%s327 + $0xd0] sm:$0xff] %v1459
        %1513 = vst [vmem:[%s327 + $0xd8] sm:$0xff] %v1464
        %1514 = vst [vmem:[%s327 + $0xe0] sm:$0xff] %v1469
        %1515 = vst [vmem:[%s327 + $0xe8] sm:$0xff] %v1474
        %1516 = vst [vmem:[%s327 + $0xf0] sm:$0xff] %v1479
        %1517 = vst [vmem:[%s327 + $0xf8] sm:$0xff] %v1484
        %s1518 = sand.u32 %s187, 1
        %s1519 = scalar_lea.sflag [#allocation5], %s1518
        %s1520 = sand.u32 %s187, 1
        %s1521 = smul.addr %s1520, 256
        %s1522 = scalar_lea.vmem [#allocation9], %s1521
        // Predicated region
        $region61: #{tpu_custom_call.1} parent=47 // pred_check
          %p1523 = pneg %p197
        $region62: #{tpu_custom_call.1} parent=47 // pred_check_branch
          %1525 = sbr.rel (%p1523) target = $region64
        $region63: #{tpu_custom_call.1} parent=47 // pred_region
          %s1526 = smul.u32 32, %s27
          %s1528 = ssub.s32 4096, 4096
          %1529 = vsyncadd %s1519, %s1528
          %s1530 = smul.addr %s1526, 128
          %s1531 = scalar_lea.hbm %s7, %s1530
          %s1532 = sshll.u32 %s1522, 4
          %s1533 = int_to_ptr.vmem [resolvable:$true] %s1532
          %1538 = dma.vmem_to_hbm [thread:$0]  %s1533, 4096, %s1531, %s1519, 128, 128, 8
        $region64: #{tpu_custom_call.1} parent=47 // pred_fallthru
          _
      $region48: #{tpu_custom_call.1} parent=5 // pred_fallthru
        _
      %p1539 = scmp.le.s32.totalorder 2, %s22
      // Predicated region
      $region65: #{tpu_custom_call.1} parent=5 // pred_check
        %p1540 = pneg %p1539
      $region66: #{tpu_custom_call.1} parent=5 // pred_check_branch
        %1542 = sbr.rel (%p1540) target = $region68
      $region67: #{tpu_custom_call.1} parent=5 // pred_region
        %s1543 = ssub.s32 %s22, 2
        // Predicated region
        $region69: #{tpu_custom_call.1} parent=67 // pred_check
          %p1544 = pneg %p203
        $region70: #{tpu_custom_call.1} parent=67 // pred_check_branch
          %1546 = sbr.rel (%p1544) target = $region72
        $region71: #{tpu_custom_call.1} parent=67 // pred_region
          %s1547 = sand.u32 %s188, 1
          %s1548 = scalar_lea.sflag [#allocation5], %s1547
          %s1549 = sand.u32 %s188, 1
          %s1550 = smul.addr %s1549, 256
          %s1551 = scalar_lea.vmem [#allocation9], %s1550
          %1552 = dma.done %s1548, 4096
        $region72: #{tpu_custom_call.1} parent=67 // pred_fallthru
          _
      $region68: #{tpu_custom_call.1} parent=5 // pred_fallthru
        _
    $region6: #{tpu_custom_call.1} parent=1 // loop_footer
      %s26 = sadd.s32 1, %s22
    $region7: #{tpu_custom_call.1} parent=1 // loop_footer_branch
      %21 = sbr.rel target = $region3
    $region8: #{tpu_custom_call.1} parent=1 // loop_exit
      _
    %1553 = vsyncpa [#allocation4], 1
    %s1554 = scalar_lea.sflag [#allocation4], 1
    %1555 = vsyncpa %s1554, 1
    %1556 = vsyncpa [#allocation7], 1
    %1557 = vsyncpa [#allocation5], 1
    %s1558 = scalar_lea.sflag [#allocation5], 1
    %1559 = vsyncpa %s1558, 1

</llo_original>
